<compile_context>
chip_gen: v5e
topology: v5e:2x2
jax: 0.10.0
libtpu: 0.0.40
codegen_flags: <defaults>
</compile_context>

<pallas_src>
import functools
import math

import jax
import jax.numpy as jnp
from jax.experimental import pallas as pl
from jax.experimental.pallas import tpu as pltpu

_PI_TORCH = 3.14159265          # matches the constant used in the PyTorch code
_HALF_PI = math.pi / 2.0
STRIDE_MAP = {'P3': 8, 'P4': 16, 'P5': 32, 'P6': 64}

# Dense per-anchor aux layout (field-major; each field is an (8, Npad//8)
# block so every in-kernel box intermediate is a fully dense vreg tile):
#   field 0..3 : predicted (tx, ty, tw, th)
#   field 4..7 : target    (tx, ty, tw, th)
#   field 8    : x grid index
#   field 9    : y grid index
#   field 10   : stride of the anchor's level
#   field 11   : per-anchor box weight  (1 / n_level, 0 for padded anchors)
_N_FIELDS = 12

# Per-anchor classification metadata, lane layout (2, Npad):
#   row 0 : target class id (integral value stored as f32)
#   row 1 : per-element cls weight  (1 / (n_level * C), 0 for padded anchors)


def _recip(x):
    # EUP approximate reciprocal + one Newton step -> ~f32 accuracy while the
    # transcendental lands in the otherwise-idle EUP slot (no VALU divide).
    r = pl.reciprocal(x, approx=True)
    return r * (2.0 - x * r)


def _atan_approx(x):
    # Polynomial atan (|err| ~1e-5): arctan has no guaranteed Mosaic lowering,
    # so range-reduce to [0,1] and evaluate a minimax polynomial on the VPU.
    ax = jnp.abs(x)
    big = ax > 1.0
    z = jnp.where(big, _recip(jnp.maximum(ax, 1e-30)), ax)
    z2 = z * z
    p = z * (0.9998660 + z2 * (-0.3302995 + z2 * (0.1801410
             + z2 * (-0.0851330 + z2 * 0.0208351))))
    r = jnp.where(big, _HALF_PI - p, p)
    return jnp.where(x < 0.0, -r, r)


def _lane_fold(x):
    """(R, L) -> (R, 128): fold 128-lane groups with plain vreg adds.

    Static slices at 128-lane boundaries select whole vregs (no relayout, no
    XLU cross-lane reduce); the tiny remaining reduction is done in JAX.
    """
    lanes = x.shape[1]
    acc = x[:, 0:128]
    for j in range(1, lanes // 128):
        acc = acc + x[:, j * 128:(j + 1) * 128]
    return acc


def _fused_loss_kernel(aux_ref, meta_ref, cls_ref, box_out_ref, cls_out_ref,
                       *, alpha, eps):
    """One anchor-chunk of the fused (all-levels) detection loss.

    aux_ref     : (96, chunk//8) f32  dense per-anchor fields (layout above)
    meta_ref    : (2,  chunk)    f32  [tcls ; cls weight]
    cls_ref     : (C8, chunk)    bf16 raw class logits, anchors on lanes
    box_out_ref : (8,  128)      f32  per-chunk partial box-loss sums
    cls_out_ref : (C8, 128)      f32  per-chunk partial cls-loss sums
    """
    a = aux_ref[...]                      # single full-tile load; vreg slices below

    def fld(i):                           # dense (8, chunk//8) field tile
        return a[8 * i:8 * (i + 1), :]

    xg, yg, s, box_w = fld(8), fld(9), fld(10), fld(11)

    def decode_xyxy(base):
        cx = (xg + fld(base + 0)) * s
        cy = (yg + fld(base + 1)) * s
        w = fld(base + 2) * s
        h = fld(base + 3) * s
        return cx - 0.5 * w, cy - 0.5 * h, cx + 0.5 * w, cy + 0.5 * h

    px1, py1, px2, py2 = decode_xyxy(0)   # predicted boxes (xyxy)
    tx1, ty1, tx2, ty2 = decode_xyxy(4)   # target boxes (xyxy)

    # ---- IoU ----
    ix1 = jnp.maximum(px1, tx1)
    iy1 = jnp.maximum(py1, ty1)
    ix2 = jnp.minimum(px2, tx2)
    iy2 = jnp.minimum(py2, ty2)
    inter = jnp.maximum(ix2 - ix1, 0.0) * jnp.maximum(iy2 - iy1, 0.0)
    w1 = jnp.maximum(px2 - px1, 0.0)
    h1 = jnp.maximum(py2 - py1, 0.0)
    w2 = jnp.maximum(tx2 - tx1, 0.0)
    h2 = jnp.maximum(ty2 - ty1, 0.0)
    union = w1 * h1 + w2 * h2 - inter + eps
    iou = inter * _recip(union)

    # ---- CIoU terms ----
    cdist = ((px1 + px2) * 0.5 - (tx1 + tx2) * 0.5) ** 2 + \
            ((py1 + py2) * 0.5 - (ty1 + ty2) * 0.5) ** 2
    ew = jnp.maximum(jnp.maximum(px2, tx2) - jnp.minimum(px1, tx1), 0.0)
    eh = jnp.maximum(jnp.maximum(py2, ty2) - jnp.minimum(py1, ty1), 0.0)
    c_enc = ew * ew + eh * eh + eps

    datan = _atan_approx(w2 * _recip(h2 + eps)) - _atan_approx(w1 * _recip(h1 + eps))
    v = (4.0 / (_PI_TORCH ** 2)) * datan * datan
    # NOTE: PyTorch computes alpha under torch.no_grad(); this kernel is the
    # forward pass only (identical value) — training would need a custom_vjp.
    alpha_ciou = v * _recip(1.0 - iou + v + eps)
    ciou = iou - (cdist * _recip(c_enc) + alpha_ciou * v)
    # box_w already encodes 1/n_level and zeros out padded anchors.
    box_out_ref[...] = _lane_fold((1.0 - ciou) * box_w)

    # ---- Focal BCE (gamma = 2.0 as a square), lane-dense (C8, chunk) ----
    logits = cls_ref[...].astype(jnp.float32)
    tcls = meta_ref[0:1, :].astype(jnp.int32)            # (1, chunk) int compare
    cls_w = meta_ref[1:2, :]                             # (1, chunk)
    t = jax.lax.broadcasted_iota(jnp.int32, logits.shape, 0) == tcls  # one-hot mask

    e = jnp.exp(-jnp.abs(logits))                        # shared exp
    one_p_e = 1.0 + e
    relu_x = jnp.maximum(logits, 0.0)
    bce = jnp.where(t, relu_x - logits, relu_x) + jnp.log(one_p_e)
    inv1pe = pl.reciprocal(one_p_e, approx=True)         # EUP only; loss-grade acc.
    prob = jnp.where(logits >= 0.0, inv1pe, e * inv1pe)  # sigmoid from shared exp
    one_m_pt = jnp.where(t, 1.0 - prob, prob)            # 1 - pt via select
    alpha_f = jnp.where(t, alpha, 1.0 - alpha)
    focal = alpha_f * one_m_pt * one_m_pt * bce * cls_w  # cls_w has 1/(n*C), 0 on pad
    cls_out_ref[...] = _lane_fold(focal)


def _pad_and_chunk(n, max_chunk=4096):
    """Pad the anchor count so anchors split into equal lane-friendly chunks.

    chunk % 1024 == 0 keeps the dense aux layout (anchors over 8 sublanes x
    chunk//8 lanes) on 128-lane block boundaries.
    """
    n_pad = -(-n // 1024) * 1024
    if n_pad <= max_chunk:
        return n_pad, n_pad
    n_pad = -(-n // max_chunk) * max_chunk
    return n_pad, max_chunk


def _fused_losses(aux, meta, logits, chunk):
    n_rows = aux.shape[0]                 # 12 * 8 = 96
    c8 = logits.shape[0]
    n_pad = meta.shape[1]
    num_chunks = n_pad // chunk
    cl8 = chunk // 8
    kernel = functools.partial(_fused_loss_kernel, alpha=0.25, eps=1e-7)
    box_part, cls_part = pl.pallas_call(
        kernel,
        out_shape=(jax.ShapeDtypeStruct((num_chunks, 8, 128), jnp.float32),
                   jax.ShapeDtypeStruct((num_chunks, c8, 128), jnp.float32)),
        grid=(num_chunks,),
        in_specs=[
            pl.BlockSpec((n_rows, cl8), lambda i: (0, i)),
            pl.BlockSpec((2, chunk), lambda i: (0, i)),
            # TODO(synk): on v5e, pipeline_mode=pl.Buffered(3) here if profiling
            # shows exposed DMA on the logits stream.
            pl.BlockSpec((c8, chunk), lambda i: (0, i)),
        ],
        out_specs=(
            pl.BlockSpec((None, 8, 128), lambda i: (i, 0, 0)),
            pl.BlockSpec((None, c8, 128), lambda i: (i, 0, 0)),
        ),
        compiler_params=pltpu.CompilerParams(
            # Independent per-chunk partial outputs -> the chunk axis is truly
            # parallel (lets the two v7x TensorCores split the grid).
            dimension_semantics=("parallel",),
            vmem_limit_bytes=32 * 1024 * 1024,
        ),
    )(aux, meta, logits)
    # Tiny cross-chunk / cross-lane finish in plain JAX: keeps every kernel
    # step free of XLU reduces and vector->SMEM round trips.
    return jnp.sum(box_part), jnp.sum(cls_part)


def detection_seg_loss(outputs, targets, proto, num_classes,
                       mask_weight=1.0, cls_weight=1.0, box_weight=5.0):
    """JAX/Pallas equivalent of DetectionSegLoss.forward (forward pass only)."""
    del proto  # only used for device placement in the PyTorch version
    zero = jnp.float32(0.0)

    aux_parts, meta_parts, cls_parts = [], [], []
    count = 0
    for lvl, tdict in targets.items():
        stride = STRIDE_MAP[lvl]
        pred = outputs[lvl]
        b_idx = tdict['batch_idx']
        n = b_idx.shape[0]
        if n == 0:
            continue
        x_idx = tdict['x_idx']
        y_idx = tdict['y_idx']
        tb = tdict['tbox'].astype(jnp.float32)
        tcls = tdict['cls']

        # Host glue: fancy gather of the matched cells (same semantics as
        # torch pred[b_idx, :, y_idx, x_idx] -> (N, C)).
        pb = pred['box'][b_idx, :, y_idx, x_idx].astype(jnp.float32)   # (N, 4)
        pc = pred['cls'][b_idx, :, y_idx, x_idx]                       # (N, C)

        xf = x_idx.astype(jnp.float32)
        yf = y_idx.astype(jnp.float32)
        aux_parts.append(jnp.stack([
            pb[:, 0], pb[:, 1], pb[:, 2], pb[:, 3],
            tb[:, 0], tb[:, 1], tb[:, 2], tb[:, 3],
            xf, yf,
            jnp.full((n,), float(stride), jnp.float32),
            jnp.full((n,), 1.0 / n, jnp.float32),
        ], axis=0))                                                    # (12, n)
        meta_parts.append(jnp.stack([
            tcls.astype(jnp.float32),
            jnp.full((n,), 1.0 / (n * num_classes), jnp.float32),
        ], axis=0))                                                    # (2, n)
        cls_parts.append(pc.astype(jnp.bfloat16).T)                    # (C, n) bf16
        count += 1

    total_mask = zero  # mask loss is identically 0 in the reference module
    if count == 0:
        total = zero
        return total, {'loss_box': zero, 'loss_cls': zero,
                       'loss_mask': zero, 'loss_total': total}

    aux = jnp.concatenate(aux_parts, axis=1)        # (12, Ntot) f32
    meta = jnp.concatenate(meta_parts, axis=1)      # (2,  Ntot) f32
    logits = jnp.concatenate(cls_parts, axis=1)     # (C,  Ntot) bf16

    n_tot = aux.shape[1]
    n_pad, chunk = _pad_and_chunk(n_tot)
    pad = n_pad - n_tot
    if pad:                                         # padded anchors get weight 0
        aux = jnp.pad(aux, ((0, 0), (0, pad)))
        meta = jnp.pad(meta, ((0, 0), (0, pad)))
        logits = jnp.pad(logits, ((0, 0), (0, pad)))

    c8 = -(-num_classes // 8) * 8
    if c8 > num_classes:
        # Padded class rows at logit -100 contribute exactly 0 to the focal loss.
        logits = jnp.pad(logits, ((0, c8 - num_classes), (0, 0)),
                         constant_values=-100.0)

    # (12, Npad) -> (96, Npad//8): each field becomes a dense (8, Npad//8)
    # block with anchors spread over sublanes + lanes (anchor ordering is
    # irrelevant for the weighted sums, padded anchors carry zero weight).
    aux = aux.reshape(_N_FIELDS * 8, n_pad // 8)

    total_box, total_cls = _fused_losses(aux, meta, logits, chunk)
    total = (box_weight * total_box + cls_weight * total_cls
             + mask_weight * total_mask)
    return total, {'loss_box': total_box, 'loss_cls': total_cls,
                   'loss_mask': total_mask, 'loss_total': total}


# ------------------------- pure-JAX reference ------------------------------
def _reference_loss(outputs, targets, num_classes,
                    mask_weight=1.0, cls_weight=1.0, box_weight=5.0):
    eps = 1e-7
    total_box = jnp.float32(0.0)
    total_cls = jnp.float32(0.0)
    count = 0
    for lvl, tdict in targets.items():
        stride = STRIDE_MAP[lvl]
        pred = outputs[lvl]
        b_idx = tdict['batch_idx']
        if b_idx.shape[0] == 0:
            continue
        xf = tdict['x_idx'].astype(jnp.float32)
        yf = tdict['y_idx'].astype(jnp.float32)
        tbox = tdict['tbox']
        tcls = tdict['cls']
        pb = pred['box'][b_idx, :, tdict['y_idx'], tdict['x_idx']].astype(jnp.float32)
        pc = pred['cls'][b_idx, :, tdict['y_idx'], tdict['x_idx']].astype(jnp.float32)

        def dec(t):
            cx = (xf + t[:, 0]) * stride
            cy = (yf + t[:, 1]) * stride
            w = t[:, 2] * stride
            h = t[:, 3] * stride
            return jnp.stack([cx - w / 2, cy - h / 2, cx + w / 2, cy + h / 2], 1)

        b1 = dec(pb)
        b2 = dec(tbox)
        ix1 = jnp.maximum(b1[:, 0], b2[:, 0]); iy1 = jnp.maximum(b1[:, 1], b2[:, 1])
        ix2 = jnp.minimum(b1[:, 2], b2[:, 2]); iy2 = jnp.minimum(b1[:, 3], b2[:, 3])
        inter = jnp.maximum(ix2 - ix1, 0) * jnp.maximum(iy2 - iy1, 0)
        w1 = jnp.maximum(b1[:, 2] - b1[:, 0], 0); h1 = jnp.maximum(b1[:, 3] - b1[:, 1], 0)
        w2 = jnp.maximum(b2[:, 2] - b2[:, 0], 0); h2 = jnp.maximum(b2[:, 3] - b2[:, 1], 0)
        union = w1 * h1 + w2 * h2 - inter + eps
        iou = inter / union
        cdist = ((b1[:, 0] + b1[:, 2]) / 2 - (b2[:, 0] + b2[:, 2]) / 2) ** 2 + \
                ((b1[:, 1] + b1[:, 3]) / 2 - (b2[:, 1] + b2[:, 3]) / 2) ** 2
        ew = jnp.maximum(jnp.maximum(b1[:, 2], b2[:, 2]) - jnp.minimum(b1[:, 0], b2[:, 0]), 0)
        eh = jnp.maximum(jnp.maximum(b1[:, 3], b2[:, 3]) - jnp.minimum(b1[:, 1], b2[:, 1]), 0)
        c_enc = ew ** 2 + eh ** 2 + eps
        v = 4 / _PI_TORCH ** 2 * (jnp.arctan(w2 / (h2 + eps)) - jnp.arctan(w1 / (h1 + eps))) ** 2
        alpha_c = v / (1 - iou + v + eps)
        ciou = iou - (cdist / c_enc + alpha_c * v)
        total_box = total_box + jnp.mean(1 - ciou)

        t = jax.nn.one_hot(tcls, num_classes, dtype=jnp.float32)
        bce = jnp.maximum(pc, 0) - pc * t + jnp.log1p(jnp.exp(-jnp.abs(pc)))
        prob = jax.nn.sigmoid(pc)
        pt = prob * t + (1 - prob) * (1 - t)
        focal = (0.25 * t + 0.75 * (1 - t)) * (1 - pt) ** 2 * bce
        total_cls = total_cls + jnp.mean(focal)
        count += 1
    total = box_weight * total_box + cls_weight * total_cls if count else total_box + total_cls
    return total


# ---------------------------------------------------------------------------
if __name__ == "__main__":
    key = jax.random.PRNGKey(0)
    keys = iter(jax.random.split(key, 32))

    B = 2
    NUM_CLASSES = 8
    COEF = 16
    feat_sizes = {'P3': 8, 'P4': 4}       # image 64x64 -> strides 8 / 16
    n_anchors = {'P3': 8, 'P4': 6}

    outputs = {}
    targets = {}
    for lvl, hw in feat_sizes.items():
        outputs[lvl] = {
            'box': jax.random.normal(next(keys), (B, 4, hw, hw), jnp.float32),
            'cls': jax.random.normal(next(keys), (B, NUM_CLASSES, hw, hw), jnp.float32),
            'coef': jax.random.normal(next(keys), (B, COEF, hw, hw), jnp.float32),
        }
        n = n_anchors[lvl]
        frac = jax.random.uniform(next(keys), (n, 2), jnp.float32)
        wh = jax.random.uniform(next(keys), (n, 2), jnp.float32, minval=0.5, maxval=3.0)
        targets[lvl] = {
            'batch_idx': jax.random.randint(next(keys), (n,), 0, B, jnp.int32),
            'x_idx': jax.random.randint(next(keys), (n,), 0, hw, jnp.int32),
            'y_idx': jax.random.randint(next(keys), (n,), 0, hw, jnp.int32),
            'tbox': jnp.concatenate([frac, wh], axis=1),
            'cls': jax.random.randint(next(keys), (n,), 0, NUM_CLASSES, jnp.int32),
        }

    proto = jax.random.normal(next(keys), (B, COEF, 16, 16), jnp.float32)

    total, loss_dict = detection_seg_loss(outputs, targets, proto, NUM_CLASSES)
    total = jax.block_until_ready(total)

    ref_total = jax.block_until_ready(_reference_loss(outputs, targets, NUM_CLASSES))
    assert jnp.allclose(total, ref_total, rtol=2e-3, atol=2e-3), (total, ref_total)

    # TODO(synk): mask/prototype loss branch is identically zero in the reference
    # module (mask_loss = tensor(0.0)), so no mask kernel is needed.
    # TODO(synk): forward-only; jax.grad would need a custom_vjp replicating the
    # torch.no_grad() treatment of the CIoU alpha term.
    print("KERNEL_OK")
</pallas_src>

<mosaic_0001>
module attributes {stable_mosaic.version = 11 : i64} {
  func.func @_fused_loss_kernel(%arg0: i32, %arg1: memref<96x128xf32, #tpu.memory_space<vmem>>, %arg2: memref<2x1024xf32, #tpu.memory_space<vmem>>, %arg3: memref<8x1024xbf16, #tpu.memory_space<vmem>>, %arg4: memref<1x8x128xf32, #tpu.memory_space<vmem>>, %arg5: memref<1x8x128xf32, #tpu.memory_space<vmem>>) attributes {dimension_semantics = [#tpu.dimension_semantics<parallel>], iteration_bounds = array<i64: 1>, scalar_prefetch = 0 : i64, scratch_operands = 0 : i64, tpu.core_type = #tpu.core_type<tc>, window_params = [{transform_indices = @transform_0, window_bounds = array<i64: 96, 128>}, {transform_indices = @transform_1, window_bounds = array<i64: 2, 1024>}, {transform_indices = @transform_2, window_bounds = array<i64: 8, 1024>}, {transform_indices = @transform_3, window_bounds = array<i64: 1, 8, 128>}, {transform_indices = @transform_4, window_bounds = array<i64: 1, 8, 128>}]} {
    %c0 = arith.constant 0 : index
    %c0_0 = arith.constant 0 : index
    %0 = vector.load %arg1[%c0, %c0_0] : memref<96x128xf32, #tpu.memory_space<vmem>>, vector<96x128xf32>
    %1 = vector.extract_strided_slice %0 {offsets = [64, 0], sizes = [8, 128], strides = [1, 1]} : vector<96x128xf32> to vector<8x128xf32>
    %2 = vector.extract_strided_slice %0 {offsets = [72, 0], sizes = [8, 128], strides = [1, 1]} : vector<96x128xf32> to vector<8x128xf32>
    %3 = vector.extract_strided_slice %0 {offsets = [80, 0], sizes = [8, 128], strides = [1, 1]} : vector<96x128xf32> to vector<8x128xf32>
    %4 = vector.extract_strided_slice %0 {offsets = [88, 0], sizes = [8, 128], strides = [1, 1]} : vector<96x128xf32> to vector<8x128xf32>
    %5 = vector.extract_strided_slice %0 {offsets = [0, 0], sizes = [8, 128], strides = [1, 1]} : vector<96x128xf32> to vector<8x128xf32>
    %6 = arith.addf %1, %5 : vector<8x128xf32>
    %7 = arith.mulf %6, %3 : vector<8x128xf32>
    %8 = vector.extract_strided_slice %0 {offsets = [8, 0], sizes = [8, 128], strides = [1, 1]} : vector<96x128xf32> to vector<8x128xf32>
    %9 = arith.addf %2, %8 : vector<8x128xf32>
    %10 = arith.mulf %9, %3 : vector<8x128xf32>
    %11 = vector.extract_strided_slice %0 {offsets = [16, 0], sizes = [8, 128], strides = [1, 1]} : vector<96x128xf32> to vector<8x128xf32>
    %12 = arith.mulf %11, %3 : vector<8x128xf32>
    %13 = vector.extract_strided_slice %0 {offsets = [24, 0], sizes = [8, 128], strides = [1, 1]} : vector<96x128xf32> to vector<8x128xf32>
    %14 = arith.mulf %13, %3 : vector<8x128xf32>
    %cst = arith.constant 5.000000e-01 : f32
    %15 = vector.broadcast %cst : f32 to vector<8x128xf32>
    %16 = arith.mulf %15, %12 : vector<8x128xf32>
    %17 = arith.subf %7, %16 : vector<8x128xf32>
    %cst_1 = arith.constant 5.000000e-01 : f32
    %18 = vector.broadcast %cst_1 : f32 to vector<8x128xf32>
    %19 = arith.mulf %18, %14 : vector<8x128xf32>
    %20 = arith.subf %10, %19 : vector<8x128xf32>
    %cst_2 = arith.constant 5.000000e-01 : f32
    %21 = vector.broadcast %cst_2 : f32 to vector<8x128xf32>
    %22 = arith.mulf %21, %12 : vector<8x128xf32>
    %23 = arith.addf %7, %22 : vector<8x128xf32>
    %cst_3 = arith.constant 5.000000e-01 : f32
    %24 = vector.broadcast %cst_3 : f32 to vector<8x128xf32>
    %25 = arith.mulf %24, %14 : vector<8x128xf32>
    %26 = arith.addf %10, %25 : vector<8x128xf32>
    %27 = vector.extract_strided_slice %0 {offsets = [32, 0], sizes = [8, 128], strides = [1, 1]} : vector<96x128xf32> to vector<8x128xf32>
    %28 = arith.addf %1, %27 : vector<8x128xf32>
    %29 = arith.mulf %28, %3 : vector<8x128xf32>
    %30 = vector.extract_strided_slice %0 {offsets = [40, 0], sizes = [8, 128], strides = [1, 1]} : vector<96x128xf32> to vector<8x128xf32>
    %31 = arith.addf %2, %30 : vector<8x128xf32>
    %32 = arith.mulf %31, %3 : vector<8x128xf32>
    %33 = vector.extract_strided_slice %0 {offsets = [48, 0], sizes = [8, 128], strides = [1, 1]} : vector<96x128xf32> to vector<8x128xf32>
    %34 = arith.mulf %33, %3 : vector<8x128xf32>
    %35 = vector.extract_strided_slice %0 {offsets = [56, 0], sizes = [8, 128], strides = [1, 1]} : vector<96x128xf32> to vector<8x128xf32>
    %36 = arith.mulf %35, %3 : vector<8x128xf32>
    %cst_4 = arith.constant 5.000000e-01 : f32
    %37 = vector.broadcast %cst_4 : f32 to vector<8x128xf32>
    %38 = arith.mulf %37, %34 : vector<8x128xf32>
    %39 = arith.subf %29, %38 : vector<8x128xf32>
    %cst_5 = arith.constant 5.000000e-01 : f32
    %40 = vector.broadcast %cst_5 : f32 to vector<8x128xf32>
    %41 = arith.mulf %40, %36 : vector<8x128xf32>
    %42 = arith.subf %32, %41 : vector<8x128xf32>
    %cst_6 = arith.constant 5.000000e-01 : f32
    %43 = vector.broadcast %cst_6 : f32 to vector<8x128xf32>
    %44 = arith.mulf %43, %34 : vector<8x128xf32>
    %45 = arith.addf %29, %44 : vector<8x128xf32>
    %cst_7 = arith.constant 5.000000e-01 : f32
    %46 = vector.broadcast %cst_7 : f32 to vector<8x128xf32>
    %47 = arith.mulf %46, %36 : vector<8x128xf32>
    %48 = arith.addf %32, %47 : vector<8x128xf32>
    %49 = arith.maximumf %17, %39 : vector<8x128xf32>
    %50 = arith.maximumf %20, %42 : vector<8x128xf32>
    %51 = arith.minimumf %23, %45 : vector<8x128xf32>
    %52 = arith.minimumf %26, %48 : vector<8x128xf32>
    %53 = arith.subf %51, %49 : vector<8x128xf32>
    %cst_8 = arith.constant 0.000000e+00 : f32
    %54 = vector.broadcast %cst_8 : f32 to vector<8x128xf32>
    %55 = arith.maximumf %53, %54 : vector<8x128xf32>
    %56 = arith.subf %52, %50 : vector<8x128xf32>
    %cst_9 = arith.constant 0.000000e+00 : f32
    %57 = vector.broadcast %cst_9 : f32 to vector<8x128xf32>
    %58 = arith.maximumf %56, %57 : vector<8x128xf32>
    %59 = arith.mulf %55, %58 : vector<8x128xf32>
    %60 = arith.subf %23, %17 : vector<8x128xf32>
    %cst_10 = arith.constant 0.000000e+00 : f32
    %61 = vector.broadcast %cst_10 : f32 to vector<8x128xf32>
    %62 = arith.maximumf %60, %61 : vector<8x128xf32>
    %63 = arith.subf %26, %20 : vector<8x128xf32>
    %cst_11 = arith.constant 0.000000e+00 : f32
    %64 = vector.broadcast %cst_11 : f32 to vector<8x128xf32>
    %65 = arith.maximumf %63, %64 : vector<8x128xf32>
    %66 = arith.subf %45, %39 : vector<8x128xf32>
    %cst_12 = arith.constant 0.000000e+00 : f32
    %67 = vector.broadcast %cst_12 : f32 to vector<8x128xf32>
    %68 = arith.maximumf %66, %67 : vector<8x128xf32>
    %69 = arith.subf %48, %42 : vector<8x128xf32>
    %cst_13 = arith.constant 0.000000e+00 : f32
    %70 = vector.broadcast %cst_13 : f32 to vector<8x128xf32>
    %71 = arith.maximumf %69, %70 : vector<8x128xf32>
    %72 = arith.mulf %62, %65 : vector<8x128xf32>
    %73 = arith.mulf %68, %71 : vector<8x128xf32>
    %74 = arith.addf %72, %73 : vector<8x128xf32>
    %75 = arith.subf %74, %59 : vector<8x128xf32>
    %cst_14 = arith.constant 1.000000e-07 : f32
    %76 = vector.broadcast %cst_14 : f32 to vector<8x128xf32>
    %77 = arith.addf %75, %76 : vector<8x128xf32>
    %78 = tpu.reciprocal %77 {approx = true} : vector<8x128xf32> -> vector<8x128xf32>
    %79 = arith.mulf %77, %78 : vector<8x128xf32>
    %cst_15 = arith.constant 2.000000e+00 : f32
    %80 = vector.broadcast %cst_15 : f32 to vector<8x128xf32>
    %81 = arith.subf %80, %79 : vector<8x128xf32>
    %82 = arith.mulf %78, %81 : vector<8x128xf32>
    %83 = arith.mulf %59, %82 : vector<8x128xf32>
    %84 = arith.addf %17, %23 : vector<8x128xf32>
    %cst_16 = arith.constant 5.000000e-01 : f32
    %85 = vector.broadcast %cst_16 : f32 to vector<8x128xf32>
    %86 = arith.mulf %84, %85 : vector<8x128xf32>
    %87 = arith.addf %39, %45 : vector<8x128xf32>
    %cst_17 = arith.constant 5.000000e-01 : f32
    %88 = vector.broadcast %cst_17 : f32 to vector<8x128xf32>
    %89 = arith.mulf %87, %88 : vector<8x128xf32>
    %90 = arith.subf %86, %89 : vector<8x128xf32>
    %91 = arith.mulf %90, %90 : vector<8x128xf32>
    %92 = arith.addf %20, %26 : vector<8x128xf32>
    %cst_18 = arith.constant 5.000000e-01 : f32
    %93 = vector.broadcast %cst_18 : f32 to vector<8x128xf32>
    %94 = arith.mulf %92, %93 : vector<8x128xf32>
    %95 = arith.addf %42, %48 : vector<8x128xf32>
    %cst_19 = arith.constant 5.000000e-01 : f32
    %96 = vector.broadcast %cst_19 : f32 to vector<8x128xf32>
    %97 = arith.mulf %95, %96 : vector<8x128xf32>
    %98 = arith.subf %94, %97 : vector<8x128xf32>
    %99 = arith.mulf %98, %98 : vector<8x128xf32>
    %100 = arith.addf %91, %99 : vector<8x128xf32>
    %101 = arith.maximumf %23, %45 : vector<8x128xf32>
    %102 = arith.minimumf %17, %39 : vector<8x128xf32>
    %103 = arith.subf %101, %102 : vector<8x128xf32>
    %cst_20 = arith.constant 0.000000e+00 : f32
    %104 = vector.broadcast %cst_20 : f32 to vector<8x128xf32>
    %105 = arith.maximumf %103, %104 : vector<8x128xf32>
    %106 = arith.maximumf %26, %48 : vector<8x128xf32>
    %107 = arith.minimumf %20, %42 : vector<8x128xf32>
    %108 = arith.subf %106, %107 : vector<8x128xf32>
    %cst_21 = arith.constant 0.000000e+00 : f32
    %109 = vector.broadcast %cst_21 : f32 to vector<8x128xf32>
    %110 = arith.maximumf %108, %109 : vector<8x128xf32>
    %111 = arith.mulf %105, %105 : vector<8x128xf32>
    %112 = arith.mulf %110, %110 : vector<8x128xf32>
    %113 = arith.addf %111, %112 : vector<8x128xf32>
    %cst_22 = arith.constant 1.000000e-07 : f32
    %114 = vector.broadcast %cst_22 : f32 to vector<8x128xf32>
    %115 = arith.addf %113, %114 : vector<8x128xf32>
    %cst_23 = arith.constant 1.000000e-07 : f32
    %116 = vector.broadcast %cst_23 : f32 to vector<8x128xf32>
    %117 = arith.addf %71, %116 : vector<8x128xf32>
    %118 = tpu.reciprocal %117 {approx = true} : vector<8x128xf32> -> vector<8x128xf32>
    %119 = arith.mulf %117, %118 : vector<8x128xf32>
    %cst_24 = arith.constant 2.000000e+00 : f32
    %120 = vector.broadcast %cst_24 : f32 to vector<8x128xf32>
    %121 = arith.subf %120, %119 : vector<8x128xf32>
    %122 = arith.mulf %118, %121 : vector<8x128xf32>
    %123 = arith.mulf %68, %122 : vector<8x128xf32>
    %124 = math.absf %123 : vector<8x128xf32>
    %cst_25 = arith.constant 1.000000e+00 : f32
    %125 = vector.broadcast %cst_25 : f32 to vector<8x128xf32>
    %126 = arith.cmpf ogt, %124, %125 : vector<8x128xf32>
    %cst_26 = arith.constant 1.000000e-30 : f32
    %127 = vector.broadcast %cst_26 : f32 to vector<8x128xf32>
    %128 = arith.maximumf %124, %127 : vector<8x128xf32>
    %129 = tpu.reciprocal %128 {approx = true} : vector<8x128xf32> -> vector<8x128xf32>
    %130 = arith.mulf %128, %129 : vector<8x128xf32>
    %cst_27 = arith.constant 2.000000e+00 : f32
    %131 = vector.broadcast %cst_27 : f32 to vector<8x128xf32>
    %132 = arith.subf %131, %130 : vector<8x128xf32>
    %133 = arith.mulf %129, %132 : vector<8x128xf32>
    %134 = arith.select %126, %133, %124 : vector<8x128xi1>, vector<8x128xf32>
    %135 = arith.mulf %134, %134 : vector<8x128xf32>
    %cst_28 = arith.constant 2.083510e-02 : f32
    %136 = vector.broadcast %cst_28 : f32 to vector<8x128xf32>
    %137 = arith.mulf %135, %136 : vector<8x128xf32>
    %cst_29 = arith.constant -8.513300e-02 : f32
    %138 = vector.broadcast %cst_29 : f32 to vector<8x128xf32>
    %139 = arith.addf %138, %137 : vector<8x128xf32>
    %140 = arith.mulf %135, %139 : vector<8x128xf32>
    %cst_30 = arith.constant 1.801410e-01 : f32
    %141 = vector.broadcast %cst_30 : f32 to vector<8x128xf32>
    %142 = arith.addf %141, %140 : vector<8x128xf32>
    %143 = arith.mulf %135, %142 : vector<8x128xf32>
    %cst_31 = arith.constant -0.330299497 : f32
    %144 = vector.broadcast %cst_31 : f32 to vector<8x128xf32>
    %145 = arith.addf %144, %143 : vector<8x128xf32>
    %146 = arith.mulf %135, %145 : vector<8x128xf32>
    %cst_32 = arith.constant 9.998660e-01 : f32
    %147 = vector.broadcast %cst_32 : f32 to vector<8x128xf32>
    %148 = arith.addf %147, %146 : vector<8x128xf32>
    %149 = arith.mulf %134, %148 : vector<8x128xf32>
    %cst_33 = arith.constant 1.57079637 : f32
    %150 = vector.broadcast %cst_33 : f32 to vector<8x128xf32>
    %151 = arith.subf %150, %149 : vector<8x128xf32>
    %152 = arith.select %126, %151, %149 : vector<8x128xi1>, vector<8x128xf32>
    %cst_34 = arith.constant 0.000000e+00 : f32
    %153 = vector.broadcast %cst_34 : f32 to vector<8x128xf32>
    %154 = arith.cmpf olt, %123, %153 : vector<8x128xf32>
    %cst_35 = arith.constant 0.000000e+00 : f32
    %155 = vector.broadcast %cst_35 : f32 to vector<8x128xf32>
    %156 = arith.subf %155, %152 : vector<8x128xf32>
    %157 = arith.select %154, %156, %152 : vector<8x128xi1>, vector<8x128xf32>
    %cst_36 = arith.constant 1.000000e-07 : f32
    %158 = vector.broadcast %cst_36 : f32 to vector<8x128xf32>
    %159 = arith.addf %65, %158 : vector<8x128xf32>
    %160 = tpu.reciprocal %159 {approx = true} : vector<8x128xf32> -> vector<8x128xf32>
    %161 = arith.mulf %159, %160 : vector<8x128xf32>
    %cst_37 = arith.constant 2.000000e+00 : f32
    %162 = vector.broadcast %cst_37 : f32 to vector<8x128xf32>
    %163 = arith.subf %162, %161 : vector<8x128xf32>
    %164 = arith.mulf %160, %163 : vector<8x128xf32>
    %165 = arith.mulf %62, %164 : vector<8x128xf32>
    %166 = math.absf %165 : vector<8x128xf32>
    %cst_38 = arith.constant 1.000000e+00 : f32
    %167 = vector.broadcast %cst_38 : f32 to vector<8x128xf32>
    %168 = arith.cmpf ogt, %166, %167 : vector<8x128xf32>
    %cst_39 = arith.constant 1.000000e-30 : f32
    %169 = vector.broadcast %cst_39 : f32 to vector<8x128xf32>
    %170 = arith.maximumf %166, %169 : vector<8x128xf32>
    %171 = tpu.reciprocal %170 {approx = true} : vector<8x128xf32> -> vector<8x128xf32>
    %172 = arith.mulf %170, %171 : vector<8x128xf32>
    %cst_40 = arith.constant 2.000000e+00 : f32
    %173 = vector.broadcast %cst_40 : f32 to vector<8x128xf32>
    %174 = arith.subf %173, %172 : vector<8x128xf32>
    %175 = arith.mulf %171, %174 : vector<8x128xf32>
    %176 = arith.select %168, %175, %166 : vector<8x128xi1>, vector<8x128xf32>
    %177 = arith.mulf %176, %176 : vector<8x128xf32>
    %cst_41 = arith.constant 2.083510e-02 : f32
    %178 = vector.broadcast %cst_41 : f32 to vector<8x128xf32>
    %179 = arith.mulf %177, %178 : vector<8x128xf32>
    %cst_42 = arith.constant -8.513300e-02 : f32
    %180 = vector.broadcast %cst_42 : f32 to vector<8x128xf32>
    %181 = arith.addf %180, %179 : vector<8x128xf32>
    %182 = arith.mulf %177, %181 : vector<8x128xf32>
    %cst_43 = arith.constant 1.801410e-01 : f32
    %183 = vector.broadcast %cst_43 : f32 to vector<8x128xf32>
    %184 = arith.addf %183, %182 : vector<8x128xf32>
    %185 = arith.mulf %177, %184 : vector<8x128xf32>
    %cst_44 = arith.constant -0.330299497 : f32
    %186 = vector.broadcast %cst_44 : f32 to vector<8x128xf32>
    %187 = arith.addf %186, %185 : vector<8x128xf32>
    %188 = arith.mulf %177, %187 : vector<8x128xf32>
    %cst_45 = arith.constant 9.998660e-01 : f32
    %189 = vector.broadcast %cst_45 : f32 to vector<8x128xf32>
    %190 = arith.addf %189, %188 : vector<8x128xf32>
    %191 = arith.mulf %176, %190 : vector<8x128xf32>
    %cst_46 = arith.constant 1.57079637 : f32
    %192 = vector.broadcast %cst_46 : f32 to vector<8x128xf32>
    %193 = arith.subf %192, %191 : vector<8x128xf32>
    %194 = arith.select %168, %193, %191 : vector<8x128xi1>, vector<8x128xf32>
    %cst_47 = arith.constant 0.000000e+00 : f32
    %195 = vector.broadcast %cst_47 : f32 to vector<8x128xf32>
    %196 = arith.cmpf olt, %165, %195 : vector<8x128xf32>
    %cst_48 = arith.constant 0.000000e+00 : f32
    %197 = vector.broadcast %cst_48 : f32 to vector<8x128xf32>
    %198 = arith.subf %197, %194 : vector<8x128xf32>
    %199 = arith.select %196, %198, %194 : vector<8x128xi1>, vector<8x128xf32>
    %200 = arith.subf %157, %199 : vector<8x128xf32>
    %cst_49 = arith.constant 0.405284733 : f32
    %201 = vector.broadcast %cst_49 : f32 to vector<8x128xf32>
    %202 = arith.mulf %201, %200 : vector<8x128xf32>
    %203 = arith.mulf %202, %200 : vector<8x128xf32>
    %cst_50 = arith.constant 1.000000e+00 : f32
    %204 = vector.broadcast %cst_50 : f32 to vector<8x128xf32>
    %205 = arith.subf %204, %83 : vector<8x128xf32>
    %206 = arith.addf %205, %203 : vector<8x128xf32>
    %cst_51 = arith.constant 1.000000e-07 : f32
    %207 = vector.broadcast %cst_51 : f32 to vector<8x128xf32>
    %208 = arith.addf %206, %207 : vector<8x128xf32>
    %209 = tpu.reciprocal %208 {approx = true} : vector<8x128xf32> -> vector<8x128xf32>
    %210 = arith.mulf %208, %209 : vector<8x128xf32>
    %cst_52 = arith.constant 2.000000e+00 : f32
    %211 = vector.broadcast %cst_52 : f32 to vector<8x128xf32>
    %212 = arith.subf %211, %210 : vector<8x128xf32>
    %213 = arith.mulf %209, %212 : vector<8x128xf32>
    %214 = arith.mulf %203, %213 : vector<8x128xf32>
    %215 = tpu.reciprocal %115 {approx = true} : vector<8x128xf32> -> vector<8x128xf32>
    %216 = arith.mulf %115, %215 : vector<8x128xf32>
    %cst_53 = arith.constant 2.000000e+00 : f32
    %217 = vector.broadcast %cst_53 : f32 to vector<8x128xf32>
    %218 = arith.subf %217, %216 : vector<8x128xf32>
    %219 = arith.mulf %215, %218 : vector<8x128xf32>
    %220 = arith.mulf %100, %219 : vector<8x128xf32>
    %221 = arith.mulf %214, %203 : vector<8x128xf32>
    %222 = arith.addf %220, %221 : vector<8x128xf32>
    %223 = arith.subf %83, %222 : vector<8x128xf32>
    %cst_54 = arith.constant 1.000000e+00 : f32
    %224 = vector.broadcast %cst_54 : f32 to vector<8x128xf32>
    %225 = arith.subf %224, %223 : vector<8x128xf32>
    %226 = arith.mulf %225, %4 : vector<8x128xf32>
    %c0_55 = arith.constant 0 : index
    %c0_56 = arith.constant 0 : index
    %c0_57 = arith.constant 0 : index
    %227 = vector.load %arg4[%c0_55, %c0_56, %c0_57] : memref<1x8x128xf32, #tpu.memory_space<vmem>>, vector<1x8x128xf32>
    %228 = vector.shape_cast %227 : vector<1x8x128xf32> to vector<8x128xf32>
    %229 = vector.shape_cast %226 : vector<8x128xf32> to vector<1x8x128xf32>
    tpu.vector_store %arg4[%c0_55, %c0_56, %c0_57], %229 {strides = array<i32>} : memref<1x8x128xf32, #tpu.memory_space<vmem>>, vector<1x8x128xf32>,
    %c0_58 = arith.constant 0 : index
    %c0_59 = arith.constant 0 : index
    %230 = vector.load %arg3[%c0_58, %c0_59] : memref<8x1024xbf16, #tpu.memory_space<vmem>>, vector<8x1024xbf16>
    %231 = arith.extf %230 : vector<8x1024xbf16> to vector<8x1024xf32>
    %c0_60 = arith.constant 0 : index
    %c0_61 = arith.constant 0 : index
    %232 = vector.load %arg2[%c0_60, %c0_61] : memref<2x1024xf32, #tpu.memory_space<vmem>>, vector<1x1024xf32>
    %233 = arith.fptosi %232 : vector<1x1024xf32> to vector<1x1024xi32>
    %c1 = arith.constant 1 : index
    %c0_62 = arith.constant 0 : index
    %234 = vector.load %arg2[%c1, %c0_62] : memref<2x1024xf32, #tpu.memory_space<vmem>>, vector<1x1024xf32>
    %235 = tpu.iota {dimensions = array<i32: 0>} : vector<8x1024xi32>
    %236 = vector.broadcast %233 : vector<1x1024xi32> to vector<8x1024xi32>
    %237 = arith.cmpi eq, %235, %236 : vector<8x1024xi32>
    %238 = math.absf %231 : vector<8x1024xf32>
    %cst_63 = arith.constant 0.000000e+00 : f32
    %239 = vector.broadcast %cst_63 : f32 to vector<8x1024xf32>
    %240 = arith.subf %239, %238 : vector<8x1024xf32>
    %241 = math.exp %240 : vector<8x1024xf32>
    %cst_64 = arith.constant 1.000000e+00 : f32
    %242 = vector.broadcast %cst_64 : f32 to vector<8x1024xf32>
    %243 = arith.addf %242, %241 : vector<8x1024xf32>
    %cst_65 = arith.constant 0.000000e+00 : f32
    %244 = vector.broadcast %cst_65 : f32 to vector<8x1024xf32>
    %245 = arith.maximumf %231, %244 : vector<8x1024xf32>
    %246 = arith.subf %245, %231 : vector<8x1024xf32>
    %247 = arith.select %237, %246, %245 : vector<8x1024xi1>, vector<8x1024xf32>
    %248 = math.log %243 : vector<8x1024xf32>
    %249 = arith.addf %247, %248 : vector<8x1024xf32>
    %250 = tpu.reciprocal %243 {approx = true} : vector<8x1024xf32> -> vector<8x1024xf32>
    %cst_66 = arith.constant 0.000000e+00 : f32
    %251 = vector.broadcast %cst_66 : f32 to vector<8x1024xf32>
    %252 = arith.cmpf oge, %231, %251 : vector<8x1024xf32>
    %253 = arith.mulf %241, %250 : vector<8x1024xf32>
    %254 = arith.select %252, %250, %253 : vector<8x1024xi1>, vector<8x1024xf32>
    %cst_67 = arith.constant 1.000000e+00 : f32
    %255 = vector.broadcast %cst_67 : f32 to vector<8x1024xf32>
    %256 = arith.subf %255, %254 : vector<8x1024xf32>
    %257 = arith.select %237, %256, %254 : vector<8x1024xi1>, vector<8x1024xf32>
    %cst_68 = arith.constant 2.500000e-01 : f32
    %cst_69 = arith.constant 7.500000e-01 : f32
    %258 = vector.broadcast %cst_68 : f32 to vector<8x1024xf32>
    %259 = vector.broadcast %cst_69 : f32 to vector<8x1024xf32>
    %260 = arith.select %237, %258, %259 : vector<8x1024xi1>, vector<8x1024xf32>
    %261 = arith.mulf %260, %257 : vector<8x1024xf32>
    %262 = arith.mulf %261, %257 : vector<8x1024xf32>
    %263 = arith.mulf %262, %249 : vector<8x1024xf32>
    %264 = vector.broadcast %234 : vector<1x1024xf32> to vector<8x1024xf32>
    %265 = arith.mulf %263, %264 : vector<8x1024xf32>
    %266 = vector.extract_strided_slice %265 {offsets = [0, 0], sizes = [8, 128], strides = [1, 1]} : vector<8x1024xf32> to vector<8x128xf32>
    %267 = vector.extract_strided_slice %265 {offsets = [0, 128], sizes = [8, 128], strides = [1, 1]} : vector<8x1024xf32> to vector<8x128xf32>
    %268 = arith.addf %266, %267 : vector<8x128xf32>
    %269 = vector.extract_strided_slice %265 {offsets = [0, 256], sizes = [8, 128], strides = [1, 1]} : vector<8x1024xf32> to vector<8x128xf32>
    %270 = arith.addf %268, %269 : vector<8x128xf32>
    %271 = vector.extract_strided_slice %265 {offsets = [0, 384], sizes = [8, 128], strides = [1, 1]} : vector<8x1024xf32> to vector<8x128xf32>
    %272 = arith.addf %270, %271 : vector<8x128xf32>
    %273 = vector.extract_strided_slice %265 {offsets = [0, 512], sizes = [8, 128], strides = [1, 1]} : vector<8x1024xf32> to vector<8x128xf32>
    %274 = arith.addf %272, %273 : vector<8x128xf32>
    %275 = vector.extract_strided_slice %265 {offsets = [0, 640], sizes = [8, 128], strides = [1, 1]} : vector<8x1024xf32> to vector<8x128xf32>
    %276 = arith.addf %274, %275 : vector<8x128xf32>
    %277 = vector.extract_strided_slice %265 {offsets = [0, 768], sizes = [8, 128], strides = [1, 1]} : vector<8x1024xf32> to vector<8x128xf32>
    %278 = arith.addf %276, %277 : vector<8x128xf32>
    %279 = vector.extract_strided_slice %265 {offsets = [0, 896], sizes = [8, 128], strides = [1, 1]} : vector<8x1024xf32> to vector<8x128xf32>
    %280 = arith.addf %278, %279 : vector<8x128xf32>
    %c0_70 = arith.constant 0 : index
    %c0_71 = arith.constant 0 : index
    %c0_72 = arith.constant 0 : index
    %281 = vector.load %arg5[%c0_70, %c0_71, %c0_72] : memref<1x8x128xf32, #tpu.memory_space<vmem>>, vector<1x8x128xf32>
    %282 = vector.shape_cast %281 : vector<1x8x128xf32> to vector<8x128xf32>
    %283 = vector.shape_cast %280 : vector<8x128xf32> to vector<1x8x128xf32>
    tpu.vector_store %arg5[%c0_70, %c0_71, %c0_72], %283 {strides = array<i32>} : memref<1x8x128xf32, #tpu.memory_space<vmem>>, vector<1x8x128xf32>,
    return
  }
  func.func @transform_0(%arg0: i32) -> (i32, i32) {
    %c0_i32 = arith.constant 0 : i32
    %c0_i32_0 = arith.constant 0 : i32
    return %c0_i32, %arg0 : i32, i32
  }
  func.func @transform_1(%arg0: i32) -> (i32, i32) {
    %c0_i32 = arith.constant 0 : i32
    %c0_i32_0 = arith.constant 0 : i32
    return %c0_i32, %arg0 : i32, i32
  }
  func.func @transform_2(%arg0: i32) -> (i32, i32) {
    %c0_i32 = arith.constant 0 : i32
    %c0_i32_0 = arith.constant 0 : i32
    return %c0_i32, %arg0 : i32, i32
  }
  func.func @transform_3(%arg0: i32) -> (i32, i32, i32) {
    %c0_i32 = arith.constant 0 : i32
    %c0_i32_0 = arith.constant 0 : i32
    %c0_i32_1 = arith.constant 0 : i32
    return %arg0, %c0_i32, %c0_i32_0 : i32, i32, i32
  }
  func.func @transform_4(%arg0: i32) -> (i32, i32, i32) {
    %c0_i32 = arith.constant 0 : i32
    %c0_i32_0 = arith.constant 0 : i32
    %c0_i32_1 = arith.constant 0 : i32
    return %arg0, %c0_i32, %c0_i32_0 : i32, i32, i32
  }
}

</mosaic_0001>

<llo_original>
// kernel: tpu_custom_call.1
$region0: #{tpu_custom_call.1}
  #allocation0 [shape = 'u32[]', space=smem, size = 0x4, offset = 0x4, fixed_abs, tag = 'smem constant byte address 0x4 - core index']
  #allocation1 [shape = 'u32[72,128]{1,0:T(1,128)}', space=vmem, size = 0x9000, scoped, tag = 'internal scratch']
  %s0 = inlined_call_operand.hbm [shape: f32[96,128], index: 0, kind: input, shape index: {}]
  %s1 = inlined_call_operand.hbm [shape: f32[2,1024], index: 1, kind: input, shape index: {}]
  %s2 = inlined_call_operand.hbm [shape: bf16[8,1024], index: 2, kind: input, shape index: {}]
  %s3 = inlined_call_operand.hbm [shape: f32[1,8,128], index: 3, kind: output, shape index: {0}]
  %s4 = inlined_call_operand.hbm [shape: f32[1,8,128], index: 4, kind: output, shape index: {1}]
  %5 = xla_tuple %s3, %s4
  %s6 = sld [smem:[#allocation0]]
  $region42: #{tpu_custom_call.1} parent=0
    _
  %s8 = ssub.s32 1, %s6
  %s9 = scalar_select 0, %s8, %s6
  $region1: #{tpu_custom_call.1} parent=0
    #allocation2 [shape = 'u8[49152]{0}', space=vmem, size = 0xc000, scoped, tag = 'input window, operand 0, single buffered']
    #allocation3 [shape = 's32[1]{0}', space=sflag, size = 0x4, scoped, tag = 'scoped memory for tpu_custom_call.1']
    #allocation4 [shape = 's32[1]{0}', space=sflag, size = 0x4, scoped, tag = 'scoped memory for tpu_custom_call.1']
    #allocation5 [shape = 'u8[8192]{0}', space=vmem, size = 0x2000, scoped, tag = 'input window, operand 1, single buffered']
    #allocation6 [shape = 's32[1]{0}', space=sflag, size = 0x4, scoped, tag = 'scoped memory for tpu_custom_call.1']
    #allocation7 [shape = 'u8[16384]{0}', space=vmem, size = 0x4000, scoped, tag = 'input window, operand 2, single buffered']
    #allocation8 [shape = 'u8[4096]{0}', space=vmem, size = 0x1000, scoped, tag = 'output window, operand 0, single buffered']
    #allocation9 [shape = 'u8[4096]{0}', space=vmem, size = 0x1000, scoped, tag = 'output window, operand 1, single buffered']
    #allocation10 [shape = 's32[1]{0}', space=sflag, size = 0x4, scoped, tag = 'scoped memory for tpu_custom_call.1']
    %10 = vsyncpa [#allocation3], 0
    %11 = vsyncpa [#allocation6], 0
    %12 = vsyncpa [#allocation4], 0
    %13 = vsyncpa [#allocation10], 0
    // Predicated region
    $region2: #{tpu_custom_call.1} parent=1 // pred_check
      _
    $region3: #{tpu_custom_call.1} parent=1 // pred_check_branch
      %15 = sbr.rel (0) target = $region5
    $region4: #{tpu_custom_call.1} parent=1 // pred_region
      %17 = vsyncadd [#allocation3], 0
      %s18 = sshll.u32 %s0, 4
      %s19 = int_to_ptr.hbm [resolvable:$true] %s18
      %s20 = sshll.u32 [#allocation2], 4
      %s21 = int_to_ptr.vmem [resolvable:$true] %s20
      %26 = dma.hbm_to_vmem [thread:$0]  %s19, 1536, %s21, [#allocation3], 128, 128, 8
    $region5: #{tpu_custom_call.1} parent=1 // pred_fallthru
      _
    // Predicated region
    $region6: #{tpu_custom_call.1} parent=1 // pred_check
      _
    $region7: #{tpu_custom_call.1} parent=1 // pred_check_branch
      %28 = sbr.rel (0) target = $region9
    $region8: #{tpu_custom_call.1} parent=1 // pred_region
      %30 = vsyncadd [#allocation6], 0
      %s32 = sshll.u32 %s1, 4
      %s33 = int_to_ptr.hbm [resolvable:$true] %s32
      %s34 = sshll.u32 [#allocation5], 4
      %s35 = int_to_ptr.vmem [resolvable:$true] %s34
      %37 = dma.hbm_to_vmem [thread:$0]  %s33, 256, %s35, [#allocation6]
    $region9: #{tpu_custom_call.1} parent=1 // pred_fallthru
      _
    // Predicated region
    $region10: #{tpu_custom_call.1} parent=1 // pred_check
      _
    $region11: #{tpu_custom_call.1} parent=1 // pred_check_branch
      %39 = sbr.rel (0) target = $region13
    $region12: #{tpu_custom_call.1} parent=1 // pred_region
      %41 = vsyncadd [#allocation6], 0
      %s43 = sshll.u32 %s2, 4
      %s44 = int_to_ptr.hbm [resolvable:$true] %s43
      %s45 = sshll.u32 [#allocation7], 4
      %s46 = int_to_ptr.vmem [resolvable:$true] %s45
      %48 = dma.hbm_to_vmem [thread:$0]  %s44, 512, %s46, [#allocation6]
    $region13: #{tpu_custom_call.1} parent=1 // pred_fallthru
      _
    // Predicated region
    $region14: #{tpu_custom_call.1} parent=1 // pred_check
      _
    $region15: #{tpu_custom_call.1} parent=1 // pred_check_branch
      %50 = sbr.rel (0) target = $region17
    $region16: #{tpu_custom_call.1} parent=1 // pred_region
      %52 = dma.done [#allocation3], 1536
    $region17: #{tpu_custom_call.1} parent=1 // pred_fallthru
      _
    // Predicated region
    $region18: #{tpu_custom_call.1} parent=1 // pred_check
      _
    $region19: #{tpu_custom_call.1} parent=1 // pred_check_branch
      %54 = sbr.rel (0) target = $region21
    $region20: #{tpu_custom_call.1} parent=1 // pred_region
      %56 = dma.done [#allocation6], 256
    $region21: #{tpu_custom_call.1} parent=1 // pred_fallthru
      _
    // Predicated region
    $region22: #{tpu_custom_call.1} parent=1 // pred_check
      _
    $region23: #{tpu_custom_call.1} parent=1 // pred_check_branch
      %58 = sbr.rel (0) target = $region25
    $region24: #{tpu_custom_call.1} parent=1 // pred_region
      %60 = dma.done [#allocation6], 512
    $region25: #{tpu_custom_call.1} parent=1 // pred_fallthru
      _
    %v61 = vld [vmem:[#allocation2] sm:$0xff]
    %v62 = vld [vmem:[#allocation2 + $0x8] sm:$0xff]
    %v63 = vld [vmem:[#allocation2 + $0x10] sm:$0xff]
    %v64 = vld [vmem:[#allocation2 + $0x18] sm:$0xff]
    %v65 = vld [vmem:[#allocation2 + $0x20] sm:$0xff]
    %v66 = vld [vmem:[#allocation2 + $0x28] sm:$0xff]
    %v67 = vld [vmem:[#allocation2 + $0x30] sm:$0xff]
    %v68 = vld [vmem:[#allocation2 + $0x38] sm:$0xff]
    %v69 = vld [vmem:[#allocation2 + $0x40] sm:$0xff]
    %v70 = vld [vmem:[#allocation2 + $0x48] sm:$0xff]
    %v71 = vld [vmem:[#allocation2 + $0x50] sm:$0xff]
    %v72 = vld [vmem:[#allocation2 + $0x58] sm:$0xff]
    %v73 = vadd.f32 %v69, %v61
    %v74 = vmul.f32 %v73, %v71
    %v75 = vadd.f32 %v70, %v62
    %v76 = vmul.f32 %v75, %v71
    %v77 = vmul.f32 %v63, %v71
    %v78 = vmul.f32 %v64, %v71
    %v79 = vmul.f32 %v77, 0.5
    %v80 = vsub.f32 %v74, %v79
    %v81 = vmul.f32 %v78, 0.5
    %v82 = vsub.f32 %v76, %v81
    %v83 = vadd.f32 %v74, %v79
    %v84 = vadd.f32 %v76, %v81
    %v85 = vadd.f32 %v69, %v65
    %v86 = vmul.f32 %v85, %v71
    %v87 = vadd.f32 %v70, %v66
    %v88 = vmul.f32 %v87, %v71
    %v89 = vmul.f32 %v67, %v71
    %v90 = vmul.f32 %v68, %v71
    %v91 = vmul.f32 %v89, 0.5
    %v92 = vsub.f32 %v86, %v91
    %v93 = vmul.f32 %v90, 0.5
    %v94 = vsub.f32 %v88, %v93
    %v95 = vadd.f32 %v86, %v91
    %v96 = vadd.f32 %v88, %v93
    %v97 = vmax.f32 %v80, %v92
    %v98 = vmax.f32 %v82, %v94
    %v99 = vmin.f32 %v83, %v95
    %v100 = vmin.f32 %v84, %v96
    %v101 = vsub.f32 %v99, %v97
    %v102 = vmax.f32 %v101, 0.0
    %v103 = vsub.f32 %v100, %v98
    %v104 = vmax.f32 %v103, 0.0
    %v105 = vmul.f32 %v102, %v104
    %v106 = vsub.f32 %v83, %v80
    %v107 = vmax.f32 %v106, 0.0
    %v108 = vsub.f32 %v84, %v82
    %v109 = vmax.f32 %v108, 0.0
    %v110 = vsub.f32 %v95, %v92
    %v111 = vmax.f32 %v110, 0.0
    %v112 = vsub.f32 %v96, %v94
    %v113 = vmax.f32 %v112, 0.0
    %v114 = vmul.f32 %v107, %v109
    %v115 = vmul.f32 %v111, %v113
    %v116 = vadd.f32 %v114, %v115
    %v117 = vsub.f32 %v116, %v105
    %v118 = vadd.f32 %v117, 1e-07
    %v119 = vrcp.pop %v118
    %v120 = vmul.f32 %v118, %v119
    %v121 = vsub.f32 2.0, %v120
    %v122 = vmul.f32 %v119, %v121
    %v123 = vmul.f32 %v105, %v122
    %v124 = vadd.f32 %v80, %v83
    %v125 = vmul.f32 %v124, 0.5
    %v126 = vadd.f32 %v92, %v95
    %v127 = vmul.f32 %v126, 0.5
    %v128 = vsub.f32 %v125, %v127
    %v129 = vmul.f32 %v128, %v128
    %v130 = vadd.f32 %v82, %v84
    %v131 = vmul.f32 %v130, 0.5
    %v132 = vadd.f32 %v94, %v96
    %v133 = vmul.f32 %v132, 0.5
    %v134 = vsub.f32 %v131, %v133
    %v135 = vmul.f32 %v134, %v134
    %v136 = vadd.f32 %v129, %v135
    %v137 = vmax.f32 %v83, %v95
    %v138 = vmin.f32 %v80, %v92
    %v139 = vsub.f32 %v137, %v138
    %v140 = vmax.f32 %v139, 0.0
    %v141 = vmax.f32 %v84, %v96
    %v142 = vmin.f32 %v82, %v94
    %v143 = vsub.f32 %v141, %v142
    %v144 = vmax.f32 %v143, 0.0
    %v145 = vmul.f32 %v140, %v140
    %v146 = vmul.f32 %v144, %v144
    %v147 = vadd.f32 %v145, %v146
    %v148 = vadd.f32 %v147, 1e-07
    %v149 = vadd.f32 %v113, 1e-07
    %v150 = vrcp.pop %v149
    %v151 = vmul.f32 %v149, %v150
    %v152 = vsub.f32 2.0, %v151
    %v153 = vmul.f32 %v150, %v152
    %v154 = vmul.f32 %v111, %v153
    %v155 = vand.u32 2147483647, %v154
    %vm156 = vcmp.gt.f32.partialorder %v155, 1.0
    %v157 = vmax.f32 %v155, 1e-30
    %v158 = vrcp.pop %v157
    %v159 = vmul.f32 %v157, %v158
    %v160 = vsub.f32 2.0, %v159
    %v161 = vmul.f32 %v158, %v160
    %v162 = vsel %vm156, %v161, %v155
    %v163 = vmul.f32 %v162, %v162
    %v164 = vmul.f32 %v163, 0.0208351
    %v165 = vadd.f32 %v164, -0.085133
    %v166 = vmul.f32 %v163, %v165
    %v167 = vadd.f32 %v166, 0.180141
    %v168 = vmul.f32 %v163, %v167
    %v169 = vadd.f32 %v168, -0.3302995
    %v170 = vmul.f32 %v163, %v169
    %v171 = vadd.f32 %v170, 0.999866
    %v172 = vmul.f32 %v162, %v171
    %v173 = vsub.f32 1.5707964, %v172
    %v174 = vsel %vm156, %v173, %v172
    %vm175 = vcmp.lt.f32.partialorder %v154, 0.0
    %v176 = vsub.f32 0.0, %v174
    %v177 = vsel %vm175, %v176, %v174
    %v178 = vadd.f32 %v109, 1e-07
    %v179 = vrcp.pop %v178
    %v180 = vmul.f32 %v178, %v179
    %v181 = vsub.f32 2.0, %v180
    %v182 = vmul.f32 %v179, %v181
    %v183 = vmul.f32 %v107, %v182
    %v184 = vand.u32 2147483647, %v183
    %vm185 = vcmp.gt.f32.partialorder %v184, 1.0
    %v186 = vmax.f32 %v184, 1e-30
    %v187 = vrcp.pop %v186
    %v188 = vmul.f32 %v186, %v187
    %v189 = vsub.f32 2.0, %v188
    %v190 = vmul.f32 %v187, %v189
    %v191 = vsel %vm185, %v190, %v184
    %v192 = vmul.f32 %v191, %v191
    %v193 = vmul.f32 %v192, 0.0208351
    %v194 = vadd.f32 %v193, -0.085133
    %v195 = vmul.f32 %v192, %v194
    %v196 = vadd.f32 %v195, 0.180141
    %v197 = vmul.f32 %v192, %v196
    %v198 = vadd.f32 %v197, -0.3302995
    %v199 = vmul.f32 %v192, %v198
    %v200 = vadd.f32 %v199, 0.999866
    %v201 = vmul.f32 %v191, %v200
    %v202 = vsub.f32 1.5707964, %v201
    %v203 = vsel %vm185, %v202, %v201
    %vm204 = vcmp.lt.f32.partialorder %v183, 0.0
    %v205 = vsub.f32 0.0, %v203
    %v206 = vsel %vm204, %v205, %v203
    %v207 = vsub.f32 %v177, %v206
    %v208 = vmul.f32 %v207, 0.40528473
    %v209 = vmul.f32 %v208, %v207
    %v210 = vsub.f32 1.0, %v123
    %v211 = vadd.f32 %v210, %v209
    %v212 = vadd.f32 %v211, 1e-07
    %v213 = vrcp.pop %v212
    %v214 = vmul.f32 %v212, %v213
    %v215 = vsub.f32 2.0, %v214
    %v216 = vmul.f32 %v213, %v215
    %v217 = vmul.f32 %v209, %v216
    %v218 = vrcp.pop %v148
    %v219 = vmul.f32 %v148, %v218
    %v220 = vsub.f32 2.0, %v219
    %v221 = vmul.f32 %v218, %v220
    %v222 = vmul.f32 %v136, %v221
    %v223 = vmul.f32 %v217, %v209
    %v224 = vadd.f32 %v222, %v223
    %v225 = vsub.f32 %v123, %v224
    %v226 = vsub.f32 1.0, %v225
    %v227 = vmul.f32 %v226, %v72
    %228 = vst [vmem:[#allocation8] sm:$0xff] %v227
    %v229 = vld [vmem:[#allocation7] sm:$0xff]
    %v230 = vld [vmem:[#allocation7 + $0x8] sm:$0xff]
    %v231 = vld [vmem:[#allocation7 + $0x10] sm:$0xff]
    %v232 = vld [vmem:[#allocation7 + $0x18] sm:$0xff]
    %v233 = vunpack.c.l.bf16 %v229
    %v234 = vunpack.c.h.bf16 %v229
    %v235 = vunpack.c.l.bf16 %v230
    %v236 = vunpack.c.h.bf16 %v230
    %v237 = vunpack.c.l.bf16 %v231
    %v238 = vunpack.c.h.bf16 %v231
    %v239 = vunpack.c.l.bf16 %v232
    %v240 = vunpack.c.h.bf16 %v232
    %v241 = vld [vmem:[#allocation5] ss:$2 sm:$0xff]
    %v242 = vcvt.f32.s32.to.zero.pseudo %v241
    %s243 = scalar_lea.vmem [#allocation5], 1
    %v244 = vld [vmem:[%s243] ss:$2 sm:$0xff]
    %v245 = vlaneseq
    %v246 = vshrl.u32 %v245, 7
    %v247 = vperm.slane %v242, 0
    %v248 = vperm.slane %v242, 1
    %v249 = vperm.slane %v242, 2
    %v250 = vperm.slane %v242, 3
    %v251 = vperm.slane %v242, 4
    %v252 = vperm.slane %v242, 5
    %v253 = vperm.slane %v242, 6
    %v254 = vperm.slane %v242, 7
    %vm255 = vcmp.eq.s32.totalorder %v246, %v247
    %vm256 = vcmp.eq.s32.totalorder %v246, %v248
    %vm257 = vcmp.eq.s32.totalorder %v246, %v249
    %vm258 = vcmp.eq.s32.totalorder %v246, %v250
    %vm259 = vcmp.eq.s32.totalorder %v246, %v251
    %vm260 = vcmp.eq.s32.totalorder %v246, %v252
    %vm261 = vcmp.eq.s32.totalorder %v246, %v253
    %vm262 = vcmp.eq.s32.totalorder %v246, %v254
    %v263 = vand.u32 2147483647, %v233
    %v264 = vand.u32 2147483647, %v234
    %v265 = vand.u32 2147483647, %v235
    %v266 = vand.u32 2147483647, %v236
    %v267 = vand.u32 2147483647, %v237
    %v268 = vand.u32 2147483647, %v238
    %v269 = vand.u32 2147483647, %v239
    %v270 = vand.u32 2147483647, %v240
    %v271 = vsub.f32 0.0, %v263
    %v272 = vsub.f32 0.0, %v264
    %v273 = vsub.f32 0.0, %v265
    %v274 = vsub.f32 0.0, %v266
    %v275 = vsub.f32 0.0, %v267
    %v276 = vsub.f32 0.0, %v268
    %v277 = vsub.f32 0.0, %v269
    %v278 = vsub.f32 0.0, %v270
    %v279 = vmul.f32 %v271, 1.442695
    %v280 = vpow.pop %v279
    %v281 = vmul.f32 %v272, 1.442695
    %v282 = vpow.pop %v281
    %v283 = vmul.f32 %v273, 1.442695
    %v284 = vpow.pop %v283
    %v285 = vmul.f32 %v274, 1.442695
    %v286 = vpow.pop %v285
    %v287 = vmul.f32 %v275, 1.442695
    %v288 = vpow.pop %v287
    %v289 = vmul.f32 %v276, 1.442695
    %v290 = vpow.pop %v289
    %v291 = vmul.f32 %v277, 1.442695
    %v292 = vpow.pop %v291
    %v293 = vmul.f32 %v278, 1.442695
    %v294 = vpow.pop %v293
    %v295 = vadd.f32 %v280, 1.0
    %v296 = vadd.f32 %v282, 1.0
    %v297 = vadd.f32 %v284, 1.0
    %v298 = vadd.f32 %v286, 1.0
    %v299 = vadd.f32 %v288, 1.0
    %v300 = vadd.f32 %v290, 1.0
    %v301 = vadd.f32 %v292, 1.0
    %v302 = vadd.f32 %v294, 1.0
    %v303 = vmax.f32 %v233, 0.0
    %v304 = vmax.f32 %v234, 0.0
    %v305 = vmax.f32 %v235, 0.0
    %v306 = vmax.f32 %v236, 0.0
    %v307 = vmax.f32 %v237, 0.0
    %v308 = vmax.f32 %v238, 0.0
    %v309 = vmax.f32 %v239, 0.0
    %v310 = vmax.f32 %v240, 0.0
    %v311 = vsub.f32 %v303, %v233
    %v312 = vsub.f32 %v304, %v234
    %v313 = vsub.f32 %v305, %v235
    %v314 = vsub.f32 %v306, %v236
    %v315 = vsub.f32 %v307, %v237
    %v316 = vsub.f32 %v308, %v238
    %v317 = vsub.f32 %v309, %v239
    %v318 = vsub.f32 %v310, %v240
    %v319 = vsel %vm255, %v311, %v303
    %v320 = vsel %vm256, %v312, %v304
    %v321 = vsel %vm257, %v313, %v305
    %v322 = vsel %vm258, %v314, %v306
    %v323 = vsel %vm259, %v315, %v307
    %v324 = vsel %vm260, %v316, %v308
    %v325 = vsel %vm261, %v317, %v309
    %v326 = vsel %vm262, %v318, %v310
    %v327 = vlog2.pop %v295
    %v328 = vmul.f32 %v327, 0.6931472
    %v329 = vlog2.pop %v296
    %v330 = vmul.f32 %v329, 0.6931472
    %v331 = vlog2.pop %v297
    %v332 = vmul.f32 %v331, 0.6931472
    %v333 = vlog2.pop %v298
    %v334 = vmul.f32 %v333, 0.6931472
    %v335 = vlog2.pop %v299
    %v336 = vmul.f32 %v335, 0.6931472
    %v337 = vlog2.pop %v300
    %v338 = vmul.f32 %v337, 0.6931472
    %v339 = vlog2.pop %v301
    %v340 = vmul.f32 %v339, 0.6931472
    %v341 = vlog2.pop %v302
    %v342 = vmul.f32 %v341, 0.6931472
    %v343 = vadd.f32 %v319, %v328
    %v344 = vadd.f32 %v320, %v330
    %v345 = vadd.f32 %v321, %v332
    %v346 = vadd.f32 %v322, %v334
    %v347 = vadd.f32 %v323, %v336
    %v348 = vadd.f32 %v324, %v338
    %v349 = vadd.f32 %v325, %v340
    %v350 = vadd.f32 %v326, %v342
    %v351 = vrcp.pop %v295
    %v352 = vrcp.pop %v296
    %v353 = vrcp.pop %v297
    %v354 = vrcp.pop %v298
    %v355 = vrcp.pop %v299
    %v356 = vrcp.pop %v300
    %v357 = vrcp.pop %v301
    %v358 = vrcp.pop %v302
    %vm359 = vcmp.ge.f32.partialorder %v233, 0.0
    %vm360 = vcmp.ge.f32.partialorder %v234, 0.0
    %vm361 = vcmp.ge.f32.partialorder %v235, 0.0
    %vm362 = vcmp.ge.f32.partialorder %v236, 0.0
    %vm363 = vcmp.ge.f32.partialorder %v237, 0.0
    %vm364 = vcmp.ge.f32.partialorder %v238, 0.0
    %vm365 = vcmp.ge.f32.partialorder %v239, 0.0
    %vm366 = vcmp.ge.f32.partialorder %v240, 0.0
    %v367 = vmul.f32 %v280, %v351
    %v368 = vmul.f32 %v282, %v352
    %v369 = vmul.f32 %v284, %v353
    %v370 = vmul.f32 %v286, %v354
    %v371 = vmul.f32 %v288, %v355
    %v372 = vmul.f32 %v290, %v356
    %v373 = vmul.f32 %v292, %v357
    %v374 = vmul.f32 %v294, %v358
    %v375 = vsel %vm359, %v351, %v367
    %v376 = vsel %vm360, %v352, %v368
    %v377 = vsel %vm361, %v353, %v369
    %v378 = vsel %vm362, %v354, %v370
    %v379 = vsel %vm363, %v355, %v371
    %v380 = vsel %vm364, %v356, %v372
    %v381 = vsel %vm365, %v357, %v373
    %v382 = vsel %vm366, %v358, %v374
    %v383 = vsub.f32 1.0, %v375
    %v384 = vsub.f32 1.0, %v376
    %v385 = vsub.f32 1.0, %v377
    %v386 = vsub.f32 1.0, %v378
    %v387 = vsub.f32 1.0, %v379
    %v388 = vsub.f32 1.0, %v380
    %v389 = vsub.f32 1.0, %v381
    %v390 = vsub.f32 1.0, %v382
    %v391 = vsel %vm255, %v383, %v375
    %v392 = vsel %vm256, %v384, %v376
    %v393 = vsel %vm257, %v385, %v377
    %v394 = vsel %vm258, %v386, %v378
    %v395 = vsel %vm259, %v387, %v379
    %v396 = vsel %vm260, %v388, %v380
    %v397 = vsel %vm261, %v389, %v381
    %v398 = vsel %vm262, %v390, %v382
    %v399 = vsel %vm255, 0.25, 0.75
    %v400 = vsel %vm256, 0.25, 0.75
    %v401 = vsel %vm257, 0.25, 0.75
    %v402 = vsel %vm258, 0.25, 0.75
    %v403 = vsel %vm259, 0.25, 0.75
    %v404 = vsel %vm260, 0.25, 0.75
    %v405 = vsel %vm261, 0.25, 0.75
    %v406 = vsel %vm262, 0.25, 0.75
    %v407 = vmul.f32 %v399, %v391
    %v408 = vmul.f32 %v400, %v392
    %v409 = vmul.f32 %v401, %v393
    %v410 = vmul.f32 %v402, %v394
    %v411 = vmul.f32 %v403, %v395
    %v412 = vmul.f32 %v404, %v396
    %v413 = vmul.f32 %v405, %v397
    %v414 = vmul.f32 %v406, %v398
    %v415 = vmul.f32 %v407, %v391
    %v416 = vmul.f32 %v408, %v392
    %v417 = vmul.f32 %v409, %v393
    %v418 = vmul.f32 %v410, %v394
    %v419 = vmul.f32 %v411, %v395
    %v420 = vmul.f32 %v412, %v396
    %v421 = vmul.f32 %v413, %v397
    %v422 = vmul.f32 %v414, %v398
    %v423 = vmul.f32 %v415, %v343
    %v424 = vmul.f32 %v416, %v344
    %v425 = vmul.f32 %v417, %v345
    %v426 = vmul.f32 %v418, %v346
    %v427 = vmul.f32 %v419, %v347
    %v428 = vmul.f32 %v420, %v348
    %v429 = vmul.f32 %v421, %v349
    %v430 = vmul.f32 %v422, %v350
    %v432 = vperm.slane %v244, 0
    %v433 = vperm.slane %v244, 1
    %v434 = vperm.slane %v244, 2
    %v435 = vperm.slane %v244, 3
    %v436 = vperm.slane %v244, 4
    %v437 = vperm.slane %v244, 5
    %v438 = vperm.slane %v244, 6
    %v439 = vperm.slane %v244, 7
    %v448 = vmul.f32 %v423, %v432
    %v449 = vmul.f32 %v424, %v433
    %v450 = vmul.f32 %v425, %v434
    %v451 = vmul.f32 %v426, %v435
    %v452 = vmul.f32 %v427, %v436
    %v453 = vmul.f32 %v428, %v437
    %v454 = vmul.f32 %v429, %v438
    %v455 = vmul.f32 %v430, %v439
    %v456 = vadd.f32 %v448, %v449
    %v457 = vadd.f32 %v456, %v450
    %v458 = vadd.f32 %v457, %v451
    %v459 = vadd.f32 %v458, %v452
    %v460 = vadd.f32 %v459, %v453
    %v461 = vadd.f32 %v460, %v454
    %v462 = vadd.f32 %v461, %v455
    %463 = vst [vmem:[#allocation9] sm:$0xff] %v462
    // Predicated region
    $region26: #{tpu_custom_call.1} parent=1 // pred_check
      _
    $region27: #{tpu_custom_call.1} parent=1 // pred_check_branch
      %465 = sbr.rel (0) target = $region29
    $region28: #{tpu_custom_call.1} parent=1 // pred_region
      %467 = vsyncadd [#allocation4], 0
      %s469 = sshll.u32 [#allocation8], 4
      %s470 = int_to_ptr.vmem [resolvable:$true] %s469
      %s471 = sshll.u32 %s3, 4
      %s472 = int_to_ptr.hbm [resolvable:$true] %s471
      %474 = dma.vmem_to_hbm [thread:$0]  %s470, 128, %s472, [#allocation4]
    $region29: #{tpu_custom_call.1} parent=1 // pred_fallthru
      _
    // Predicated region
    $region30: #{tpu_custom_call.1} parent=1 // pred_check
      _
    $region31: #{tpu_custom_call.1} parent=1 // pred_check_branch
      %476 = sbr.rel (0) target = $region33
    $region32: #{tpu_custom_call.1} parent=1 // pred_region
      %478 = vsyncadd [#allocation10], 0
      %s480 = sshll.u32 [#allocation9], 4
      %s481 = int_to_ptr.vmem [resolvable:$true] %s480
      %s482 = sshll.u32 %s4, 4
      %s483 = int_to_ptr.hbm [resolvable:$true] %s482
      %485 = dma.vmem_to_hbm [thread:$0]  %s481, 128, %s483, [#allocation10]
    $region33: #{tpu_custom_call.1} parent=1 // pred_fallthru
      _
    // Predicated region
    $region34: #{tpu_custom_call.1} parent=1 // pred_check
      _
    $region35: #{tpu_custom_call.1} parent=1 // pred_check_branch
      %487 = sbr.rel (0) target = $region37
    $region36: #{tpu_custom_call.1} parent=1 // pred_region
      %489 = dma.done [#allocation4], 128
    $region37: #{tpu_custom_call.1} parent=1 // pred_fallthru
      _
    // Predicated region
    $region38: #{tpu_custom_call.1} parent=1 // pred_check
      _
    $region39: #{tpu_custom_call.1} parent=1 // pred_check_branch
      %491 = sbr.rel (0) target = $region41
    $region40: #{tpu_custom_call.1} parent=1 // pred_region
      %493 = dma.done [#allocation10], 128
    $region41: #{tpu_custom_call.1} parent=1 // pred_fallthru
      _
    %494 = vsyncpa [#allocation3], 1
    %495 = vsyncpa [#allocation6], 1
    %496 = vsyncpa [#allocation4], 1
    %497 = vsyncpa [#allocation10], 1

</llo_original>
